<compile_context>
chip_gen: v5e
topology: v5e:2x2
jax: 0.10.0
libtpu: 0.0.40
codegen_flags: <defaults>
</compile_context>

<pallas_src>
import jax
import jax.numpy as jnp
from jax.experimental import pallas as pl
from jax.experimental.pallas import tpu as pltpu


def _round_up(a: int, b: int) -> int:
    return (a + b - 1) // b * b


def _num_tensorcores() -> int:
    """Best-effort TensorCore count; falls back to 1 (safe: no forced split)."""
    try:
        info = pltpu.get_tpu_info()
        for name in ("num_cores", "core_count", "num_tensorcores", "tensorcore_count"):
            v = getattr(info, name, None)
            if v:
                return int(v)
    except Exception:
        pass
    try:
        return int(getattr(jax.devices()[0], "num_cores", 0) or 1)
    except Exception:
        return 1


def ffn_kernel(x_ref, w1t_ref, b1_ref, w2t_ref, b2_ref, o_ref):
    # x_ref: (tn, H) in the caller's dtype (tokens on sublanes, H on lanes)
    # w1t_ref, w2t_ref: (H, H) bf16, already transposed to (in, out)
    # b1_ref, b2_ref: (1, H) f32
    x = x_ref[...]
    x_f32 = x.astype(jnp.float32)            # residual path, full precision
    x_bf = x.astype(jnp.bfloat16)            # MXU input, cast in-kernel

    h = jnp.dot(x_bf, w1t_ref[...], preferred_element_type=jnp.float32)
    h = jnp.maximum(h + b1_ref[...], 0.0)    # bias + ReLU in f32 (VPU)

    y = jnp.dot(h.astype(jnp.bfloat16), w2t_ref[...],
                preferred_element_type=jnp.float32)
    y = y + b2_ref[...] + x_f32              # bias + residual in f32

    o_ref[...] = y.astype(o_ref.dtype)


def pointwise_feedforward(x, w1, b1, w2, b2, *, tokens_per_tile=4096):
    """x: (B, L, H). w1, w2: (H, H) Conv1d weights (out, in). b1, b2: (H,)."""
    B, L, H = x.shape
    N = B * L
    out_dtype = x.dtype

    # ---- token-tile size --------------------------------------------------
    tn = max(8, _round_up(int(tokens_per_tile), 8))
    if N <= tn:
        # Single tile covering the whole (flattened) token axis; block ==
        # array extent, so no divisibility constraint and no padding rows.
        tn = N
    else:
        ncores = _num_tensorcores()
        min_tiles = 2 * ncores                      # >=2 steps per core
        if ncores > 1 and pl.cdiv(N, tn) < min_tiles and N >= 512 * min_tiles:
            tn = max(512, _round_up(pl.cdiv(N, min_tiles), 256))
    grid = (pl.cdiv(N, tn),)

    # ---- operands (no full-tensor layout passes) --------------------------
    x2d = x.reshape(N, H)                           # free, row-major view
    # Weights are tiny (HxH); transpose/cast once. Kept bf16 for the MXU.
    w1t = jnp.asarray(w1).astype(jnp.bfloat16).T    # (in, out)
    w2t = jnp.asarray(w2).astype(jnp.bfloat16).T
    b1r = jnp.asarray(b1, jnp.float32).reshape(1, H)
    b2r = jnp.asarray(b2, jnp.float32).reshape(1, H)

    itemsize = jnp.dtype(out_dtype).itemsize
    cost = pl.CostEstimate(
        flops=4 * N * H * H,
        transcendentals=0,
        bytes_accessed=N * H * (jnp.dtype(x.dtype).itemsize + itemsize)
        + 2 * H * H * 2 + 2 * H * 4,
    )

    # NOTE: weights/biases are grid-resident and tiny at SASRec sizes; for
    # very large H, single-buffer them (pipeline_mode=pl.Buffered(1)) and/or
    # tile the contraction dim to respect v7x's 64 MiB VMEM.
    out = pl.pallas_call(
        ffn_kernel,
        out_shape=jax.ShapeDtypeStruct((N, H), out_dtype),
        grid_spec=pl.GridSpec(
            grid=grid,
            in_specs=[
                pl.BlockSpec((tn, H), lambda i: (i, 0)),   # x token tile
                pl.BlockSpec((H, H), lambda i: (0, 0)),    # W1^T (resident)
                pl.BlockSpec((1, H), lambda i: (0, 0)),    # b1
                pl.BlockSpec((H, H), lambda i: (0, 0)),    # W2^T (resident)
                pl.BlockSpec((1, H), lambda i: (0, 0)),    # b2
            ],
            out_specs=pl.BlockSpec((tn, H), lambda i: (i, 0)),
        ),
        compiler_params=pltpu.CompilerParams(
            dimension_semantics=("parallel",),
        ),
        cost_estimate=cost,
    )(x2d, w1t, b1r, w2t, b2r)

    return out.reshape(B, L, H)


def reference(x, w1, b1, w2, b2):
    # Mirrors the kernel's quantization contract: matmul inputs in bf16,
    # accumulation / bias / ReLU / residual in f32, residual uses original x.
    xf = x.astype(jnp.float32)
    xq = xf.astype(jnp.bfloat16).astype(jnp.float32)
    w1q = jnp.asarray(w1).astype(jnp.bfloat16).astype(jnp.float32)
    w2q = jnp.asarray(w2).astype(jnp.bfloat16).astype(jnp.float32)
    h = jnp.maximum(jnp.einsum("blh,oh->blo", xq, w1q) + b1, 0.0)
    hq = h.astype(jnp.bfloat16).astype(jnp.float32)
    y = jnp.einsum("blh,oh->blo", hq, w2q) + b2
    return y + xf


if __name__ == "__main__":
    key = jax.random.PRNGKey(0)
    k_x, k_w1, k_b1, k_w2, k_b2, k_x2 = jax.random.split(key, 6)

    H = 32  # hidden_units
    scale = 1.0 / jnp.sqrt(H)
    # Conv1d(H, H, kernel_size=1) weights: (out, in, 1) -> squeeze to (out, in)
    w1 = jax.random.uniform(k_w1, (H, H), minval=-scale, maxval=scale, dtype=jnp.float32)
    b1 = jax.random.uniform(k_b1, (H,), minval=-scale, maxval=scale, dtype=jnp.float32)
    w2 = jax.random.uniform(k_w2, (H, H), minval=-scale, maxval=scale, dtype=jnp.float32)
    b2 = jax.random.uniform(k_b2, (H,), minval=-scale, maxval=scale, dtype=jnp.float32)

    # Small shape implied by the module (batch=2, seq=8, hidden=32): single tile.
    x = jax.random.normal(k_x, (2, 8, H), dtype=jnp.float32)
    out = jax.block_until_ready(pointwise_feedforward(x, w1, b1, w2, b2))
    ref = reference(x, w1, b1, w2, b2)
    assert out.shape == x.shape
    assert jnp.allclose(out, ref, atol=2e-2, rtol=2e-2), "mismatch vs reference (small)"

    # Second shape exercising a multi-step grid with a ragged last tile
    # (N = 400 tokens, 128-token tiles -> 4 steps, last one partial).
    x2 = jax.random.normal(k_x2, (4, 100, H), dtype=jnp.float32)
    out2 = jax.block_until_ready(
        pointwise_feedforward(x2, w1, b1, w2, b2, tokens_per_tile=128))
    ref2 = reference(x2, w1, b1, w2, b2)
    assert out2.shape == x2.shape
    assert jnp.allclose(out2, ref2, atol=2e-2, rtol=2e-2), "mismatch vs reference (tiled)"

    print("KERNEL_OK")
</pallas_src>

<mosaic_0001>
module attributes {stable_mosaic.version = 11 : i64} {
  func.func @ffn_kernel(%arg0: i32, %arg1: memref<16x32xf32, #tpu.memory_space<vmem>>, %arg2: memref<32x32xbf16, #tpu.memory_space<vmem>>, %arg3: memref<1x32xf32, #tpu.memory_space<vmem>>, %arg4: memref<32x32xbf16, #tpu.memory_space<vmem>>, %arg5: memref<1x32xf32, #tpu.memory_space<vmem>>, %arg6: memref<16x32xf32, #tpu.memory_space<vmem>>) attributes {dimension_semantics = [#tpu.dimension_semantics<parallel>], iteration_bounds = array<i64: 1>, scalar_prefetch = 0 : i64, scratch_operands = 0 : i64, tpu.core_type = #tpu.core_type<tc>, window_params = [{transform_indices = @transform_0, window_bounds = array<i64: 16, 32>}, {pipeline_mode = #tpu.pipeline_mode<synchronous>, transform_indices = @transform_1, window_bounds = array<i64: 32, 32>}, {pipeline_mode = #tpu.pipeline_mode<synchronous>, transform_indices = @transform_2, window_bounds = array<i64: 1, 32>}, {pipeline_mode = #tpu.pipeline_mode<synchronous>, transform_indices = @transform_3, window_bounds = array<i64: 32, 32>}, {pipeline_mode = #tpu.pipeline_mode<synchronous>, transform_indices = @transform_4, window_bounds = array<i64: 1, 32>}, {transform_indices = @transform_5, window_bounds = array<i64: 16, 32>}]} {
    %c0 = arith.constant 0 : index
    %c0_0 = arith.constant 0 : index
    %0 = vector.load %arg1[%c0, %c0_0] : memref<16x32xf32, #tpu.memory_space<vmem>>, vector<16x32xf32>
    %1 = arith.truncf %0 : vector<16x32xf32> to vector<16x32xbf16>
    %c0_1 = arith.constant 0 : index
    %c0_2 = arith.constant 0 : index
    %2 = vector.load %arg2[%c0_1, %c0_2] : memref<32x32xbf16, #tpu.memory_space<vmem>>, vector<32x32xbf16>
    %cst = arith.constant dense<0.000000e+00> : vector<16x32xf32>
    %3 = tpu.matmul %1, %2, %cst {dimension_numbers = #tpu.dot_dimension_numbers<[1], [0], [0], [1], [0, 0, 1, 1], [], []>} : vector<16x32xbf16>, vector<32x32xbf16>, vector<16x32xf32> -> vector<16x32xf32>
    %c0_3 = arith.constant 0 : index
    %c0_4 = arith.constant 0 : index
    %4 = vector.load %arg3[%c0_3, %c0_4] : memref<1x32xf32, #tpu.memory_space<vmem>>, vector<1x32xf32>
    %5 = vector.broadcast %4 : vector<1x32xf32> to vector<16x32xf32>
    %6 = arith.addf %3, %5 : vector<16x32xf32>
    %cst_5 = arith.constant 0.000000e+00 : f32
    %7 = vector.broadcast %cst_5 : f32 to vector<16x32xf32>
    %8 = arith.maximumf %6, %7 : vector<16x32xf32>
    %9 = arith.truncf %8 : vector<16x32xf32> to vector<16x32xbf16>
    %c0_6 = arith.constant 0 : index
    %c0_7 = arith.constant 0 : index
    %10 = vector.load %arg4[%c0_6, %c0_7] : memref<32x32xbf16, #tpu.memory_space<vmem>>, vector<32x32xbf16>
    %cst_8 = arith.constant dense<0.000000e+00> : vector<16x32xf32>
    %11 = tpu.matmul %9, %10, %cst_8 {dimension_numbers = #tpu.dot_dimension_numbers<[1], [0], [0], [1], [0, 0, 1, 1], [], []>} : vector<16x32xbf16>, vector<32x32xbf16>, vector<16x32xf32> -> vector<16x32xf32>
    %c0_9 = arith.constant 0 : index
    %c0_10 = arith.constant 0 : index
    %12 = vector.load %arg5[%c0_9, %c0_10] : memref<1x32xf32, #tpu.memory_space<vmem>>, vector<1x32xf32>
    %13 = vector.broadcast %12 : vector<1x32xf32> to vector<16x32xf32>
    %14 = arith.addf %11, %13 : vector<16x32xf32>
    %15 = arith.addf %14, %0 : vector<16x32xf32>
    %c0_11 = arith.constant 0 : index
    %c0_12 = arith.constant 0 : index
    %16 = vector.load %arg6[%c0_11, %c0_12] : memref<16x32xf32, #tpu.memory_space<vmem>>, vector<16x32xf32>
    tpu.vector_store %arg6[%c0_11, %c0_12], %15 {strides = array<i32>} : memref<16x32xf32, #tpu.memory_space<vmem>>, vector<16x32xf32>,
    return
  }
  func.func @transform_0(%arg0: i32) -> (i32, i32) {
    %c0_i32 = arith.constant 0 : i32
    %c0_i32_0 = arith.constant 0 : i32
    return %arg0, %c0_i32 : i32, i32
  }
  func.func @transform_1(%arg0: i32) -> (i32, i32) {
    %c0_i32 = arith.constant 0 : i32
    %c0_i32_0 = arith.constant 0 : i32
    %c0_i32_1 = arith.constant 0 : i32
    return %c0_i32, %c0_i32_0 : i32, i32
  }
  func.func @transform_2(%arg0: i32) -> (i32, i32) {
    %c0_i32 = arith.constant 0 : i32
    %c0_i32_0 = arith.constant 0 : i32
    %c0_i32_1 = arith.constant 0 : i32
    return %c0_i32, %c0_i32_0 : i32, i32
  }
  func.func @transform_3(%arg0: i32) -> (i32, i32) {
    %c0_i32 = arith.constant 0 : i32
    %c0_i32_0 = arith.constant 0 : i32
    %c0_i32_1 = arith.constant 0 : i32
    return %c0_i32, %c0_i32_0 : i32, i32
  }
  func.func @transform_4(%arg0: i32) -> (i32, i32) {
    %c0_i32 = arith.constant 0 : i32
    %c0_i32_0 = arith.constant 0 : i32
    %c0_i32_1 = arith.constant 0 : i32
    return %c0_i32, %c0_i32_0 : i32, i32
  }
  func.func @transform_5(%arg0: i32) -> (i32, i32) {
    %c0_i32 = arith.constant 0 : i32
    %c0_i32_0 = arith.constant 0 : i32
    return %arg0, %c0_i32 : i32, i32
  }
}

</mosaic_0001>

<llo_original>
// kernel: tpu_custom_call.1
$region0: #{tpu_custom_call.1}
  #allocation0 [shape = 'u32[]', space=smem, size = 0x4, offset = 0x4, fixed_abs, tag = 'smem constant byte address 0x4 - core index']
  #allocation1 [shape = 'u32[72,128]{1,0:T(1,128)}', space=vmem, size = 0x9000, scoped, tag = 'internal scratch']
  %s0 = inlined_call_operand.hbm [shape: f32[16,32], index: 0, kind: input, shape index: {}]
  %s1 = inlined_call_operand.hbm [shape: bf16[32,32], index: 1, kind: input, shape index: {}]
  %s2 = inlined_call_operand.vmem [shape: f32[1,32], index: 2, kind: input, shape index: {}]
  %s3 = inlined_call_operand.hbm [shape: bf16[32,32], index: 3, kind: input, shape index: {}]
  %s4 = inlined_call_operand.vmem [shape: f32[1,32], index: 4, kind: input, shape index: {}]
  %s5 = inlined_call_operand.hbm [shape: f32[16,32], index: 5, kind: output, shape index: {}]
  %s6 = sld [smem:[#allocation0]]
  $region42: #{tpu_custom_call.1} parent=0
    _
  %s8 = ssub.s32 1, %s6
  %s9 = scalar_select 0, %s8, %s6
  $region1: #{tpu_custom_call.1} parent=0
    #allocation2 [shape = 'u8[8192]{0}', space=vmem, size = 0x2000, scoped, tag = 'input window, operand 0, single buffered']
    #allocation3 [shape = 's32[1]{0}', space=sflag, size = 0x4, scoped, tag = 'scoped memory for tpu_custom_call.1']
    #allocation4 [shape = 's32[1]{0}', space=sflag, size = 0x4, scoped, tag = 'scoped memory for tpu_custom_call.1']
    #allocation5 [shape = 'u8[8192]{0}', space=vmem, size = 0x2000, scoped, tag = 'input window, operand 1, single buffered']
    #allocation6 [shape = 's32[1]{0}', space=sflag, size = 0x4, scoped, tag = 'scoped memory for tpu_custom_call.1']
    #allocation7 [shape = 'u8[8192]{0}', space=vmem, size = 0x2000, scoped, tag = 'input window, operand 3, single buffered']
    #allocation8 [shape = 'u8[8192]{0}', space=vmem, size = 0x2000, scoped, tag = 'output window, operand 0, single buffered']
    %10 = vsyncpa [#allocation3], 0
    %11 = vsyncpa [#allocation6], 0
    %12 = vsyncpa [#allocation4], 0
    // Predicated region
    $region2: #{tpu_custom_call.1} parent=1 // pred_check
      _
    $region3: #{tpu_custom_call.1} parent=1 // pred_check_branch
      %14 = sbr.rel (0) target = $region5
    $region4: #{tpu_custom_call.1} parent=1 // pred_region
      %16 = vsyncadd [#allocation3], 0
      %s17 = sshll.u32 %s0, 4
      %s18 = int_to_ptr.hbm [resolvable:$true] %s17
      %s19 = sshll.u32 [#allocation2], 4
      %s20 = int_to_ptr.vmem [resolvable:$true] %s19
      %25 = dma.hbm_to_vmem [thread:$0]  %s18, 256, %s20, [#allocation3], 128, 128, 8
    $region5: #{tpu_custom_call.1} parent=1 // pred_fallthru
      _
    // Predicated region
    $region6: #{tpu_custom_call.1} parent=1 // pred_check
      _
    $region7: #{tpu_custom_call.1} parent=1 // pred_check_branch
      %27 = sbr.rel (0) target = $region9
    $region8: #{tpu_custom_call.1} parent=1 // pred_region
      %29 = vsyncadd [#allocation6], 0
      %s30 = sshll.u32 %s1, 4
      %s31 = int_to_ptr.hbm [resolvable:$true] %s30
      %s32 = sshll.u32 [#allocation5], 4
      %s33 = int_to_ptr.vmem [resolvable:$true] %s32
      %38 = dma.hbm_to_vmem [thread:$0]  %s31, 256, %s33, [#allocation6], 64, 64, 4
    $region9: #{tpu_custom_call.1} parent=1 // pred_fallthru
      _
    // Predicated region
    $region10: #{tpu_custom_call.1} parent=1 // pred_check
      _
    $region11: #{tpu_custom_call.1} parent=1 // pred_check_branch
      %40 = sbr.rel (0) target = $region13
    $region12: #{tpu_custom_call.1} parent=1 // pred_region
      _
    $region13: #{tpu_custom_call.1} parent=1 // pred_fallthru
      _
    // Predicated region
    $region14: #{tpu_custom_call.1} parent=1 // pred_check
      _
    $region15: #{tpu_custom_call.1} parent=1 // pred_check_branch
      %42 = sbr.rel (0) target = $region17
    $region16: #{tpu_custom_call.1} parent=1 // pred_region
      %44 = vsyncadd [#allocation6], 0
      %s45 = sshll.u32 %s3, 4
      %s46 = int_to_ptr.hbm [resolvable:$true] %s45
      %s47 = sshll.u32 [#allocation7], 4
      %s48 = int_to_ptr.vmem [resolvable:$true] %s47
      %53 = dma.hbm_to_vmem [thread:$0]  %s46, 256, %s48, [#allocation6], 64, 64, 4
    $region17: #{tpu_custom_call.1} parent=1 // pred_fallthru
      _
    // Predicated region
    $region18: #{tpu_custom_call.1} parent=1 // pred_check
      _
    $region19: #{tpu_custom_call.1} parent=1 // pred_check_branch
      %55 = sbr.rel (0) target = $region21
    $region20: #{tpu_custom_call.1} parent=1 // pred_region
      _
    $region21: #{tpu_custom_call.1} parent=1 // pred_fallthru
      _
    // Predicated region
    $region22: #{tpu_custom_call.1} parent=1 // pred_check
      _
    $region23: #{tpu_custom_call.1} parent=1 // pred_check_branch
      %57 = sbr.rel (0) target = $region25
    $region24: #{tpu_custom_call.1} parent=1 // pred_region
      %59 = dma.done [#allocation3], 256
    $region25: #{tpu_custom_call.1} parent=1 // pred_fallthru
      _
    // Predicated region
    $region26: #{tpu_custom_call.1} parent=1 // pred_check
      _
    $region27: #{tpu_custom_call.1} parent=1 // pred_check_branch
      %61 = sbr.rel (0) target = $region29
    $region28: #{tpu_custom_call.1} parent=1 // pred_region
      %63 = dma.done [#allocation6], 256
    $region29: #{tpu_custom_call.1} parent=1 // pred_fallthru
      _
    // Predicated region
    $region30: #{tpu_custom_call.1} parent=1 // pred_check
      _
    $region31: #{tpu_custom_call.1} parent=1 // pred_check_branch
      %65 = sbr.rel (0) target = $region33
    $region32: #{tpu_custom_call.1} parent=1 // pred_region
      %67 = dma.done [#allocation6], 256
    $region33: #{tpu_custom_call.1} parent=1 // pred_fallthru
      _
    %v69 = vld [vmem:[#allocation2] sm:$0xff]
    %v70 = vld [vmem:[#allocation2 + $0x8] sm:$0xff]
    %v71 = vpack.c.bf16 %v70, %v69
    %v72 = vld [vmem:[#allocation5] sm:$0xf]
    %v73 = vld [vmem:[#allocation5 + $0x4] sm:$0xf]
    %v74 = vld [vmem:[#allocation5 + $0x8] sm:$0xf]
    %v75 = vld [vmem:[#allocation5 + $0xc] sm:$0xf]
    %v76 = vld [vmem:[%s2] sm:$0x1]
    %v78 = vperm.slane %v76, 0
    %v84 = vunpack.c.l.b16 %v72
    %v85 = vunpack.c.l.b16 %v73
    %v86 = vunpack.c.l.b16 %v74
    %v87 = vunpack.c.l.b16 %v75
    %v88 = vpack.c.b16 %v85, %v84
    %v89 = vpack.c.b16 %v87, %v86
    %vm92 = vcmask 261120
    %v94 = vsel %vm92, %v71, 0
    %96 = vmatpush.bf16.msra.mxu0 0
    %97 = vmatpush.bf16.msra.mxu0 0
    %98 = vmatpush.bf16.msra.mxu0 0
    %99 = vmatpush.bf16.msra.mxu0 0
    %100 = vmatpush.bf16.msra.mxu0 0
    %101 = vmatpush.bf16.msra.mxu0 0
    %102 = vmatpush.bf16.msra.mxu0 %v89
    %103 = vmatpush.bf16.msra.mxu0 %v88
    %104 = vmatmul.bf16.gmra.mxu0 %v94
    %v105 = vpop.f32.mrf.mxu0
    %v106 = vadd.f32 %v78, %v105
    %v107 = vpop.f32.mrf.mxu0
    %v108 = vadd.f32 %v78, %v107
    %109 = vdwg.mxu0
    %v110 = vmax.f32 %v106, 0.0
    %v111 = vmax.f32 %v108, 0.0
    %v112 = vpack.c.bf16 %v111, %v110
    %v113 = vld [vmem:[#allocation7] sm:$0xf]
    %v114 = vld [vmem:[#allocation7 + $0x4] sm:$0xf]
    %v115 = vld [vmem:[#allocation7 + $0x8] sm:$0xf]
    %v116 = vld [vmem:[#allocation7 + $0xc] sm:$0xf]
    %v117 = vld [vmem:[%s4] sm:$0x1]
    %v119 = vperm.slane %v117, 0
    %v125 = vunpack.c.l.b16 %v113
    %v126 = vunpack.c.l.b16 %v114
    %v127 = vunpack.c.l.b16 %v115
    %v128 = vunpack.c.l.b16 %v116
    %v129 = vpack.c.b16 %v126, %v125
    %v130 = vpack.c.b16 %v128, %v127
    %v134 = vsel %vm92, %v112, 0
    %136 = vmatpush.bf16.msra.mxu0 0
    %137 = vmatpush.bf16.msra.mxu0 0
    %138 = vmatpush.bf16.msra.mxu0 0
    %139 = vmatpush.bf16.msra.mxu0 0
    %140 = vmatpush.bf16.msra.mxu0 0
    %141 = vmatpush.bf16.msra.mxu0 0
    %142 = vmatpush.bf16.msra.mxu0 %v130
    %143 = vmatpush.bf16.msra.mxu0 %v129
    %144 = vmatmul.bf16.gmra.mxu0 %v134
    %v145 = vpop.f32.mrf.mxu0
    %v146 = vadd.f32 %v119, %v145
    %v147 = vpop.f32.mrf.mxu0
    %v148 = vadd.f32 %v119, %v147
    %149 = vdwg.mxu0
    %v150 = vadd.f32 %v146, %v69
    %v151 = vadd.f32 %v148, %v70
    %152 = vst.msk [vmem:[#allocation8] sm:$0xff] %vm92, %v150
    %153 = vst.msk [vmem:[#allocation8 + $0x8] sm:$0xff] %vm92, %v151
    // Predicated region
    $region34: #{tpu_custom_call.1} parent=1 // pred_check
      _
    $region35: #{tpu_custom_call.1} parent=1 // pred_check_branch
      %155 = sbr.rel (0) target = $region37
    $region36: #{tpu_custom_call.1} parent=1 // pred_region
      %157 = vsyncadd [#allocation4], 0
      %s158 = sshll.u32 [#allocation8], 4
      %s159 = int_to_ptr.vmem [resolvable:$true] %s158
      %s160 = sshll.u32 %s5, 4
      %s161 = int_to_ptr.hbm [resolvable:$true] %s160
      %166 = dma.vmem_to_hbm [thread:$0]  %s159, 256, %s161, [#allocation4], 128, 128, 8
    $region37: #{tpu_custom_call.1} parent=1 // pred_fallthru
      _
    // Predicated region
    $region38: #{tpu_custom_call.1} parent=1 // pred_check
      _
    $region39: #{tpu_custom_call.1} parent=1 // pred_check_branch
      %168 = sbr.rel (0) target = $region41
    $region40: #{tpu_custom_call.1} parent=1 // pred_region
      %170 = dma.done [#allocation4], 256
    $region41: #{tpu_custom_call.1} parent=1 // pred_fallthru
      _
    %171 = vsyncpa [#allocation3], 1
    %172 = vsyncpa [#allocation6], 1
    %173 = vsyncpa [#allocation4], 1

</llo_original>
